<compile_context>
chip_gen: v6e
topology: v6e:2x2x1
jax: 0.10.0
libtpu: 0.0.40
codegen_flags: <defaults>
</compile_context>

<pallas_src>
import jax
import jax.numpy as jnp
import numpy as np
from jax.experimental import pallas as pl
from jax.experimental.pallas import tpu as pltpu

BN_EPS = 1e-5   # nn.BatchNorm2d default eps


# --------------------------------------------------------------------------- #
# Tiling helper
# --------------------------------------------------------------------------- #
def _pick_tile(hw, bytes_per_lane, budget=8 * 1024 * 1024):
    """Largest lane tile (multiple of 128 that divides hw) under a VMEM budget."""
    for t in (2048, 1024, 512, 256, 128):
        if hw % t == 0 and t * bytes_per_lane <= budget:
            return t
    return hw   # fall back to an untiled (full-extent) lane block


# --------------------------------------------------------------------------- #
# Generic fused kernel:  y = W @ silu(x*a + b)  (+ bias)   [+ BN stat partials]
# --------------------------------------------------------------------------- #
def _make_matmul_kernel(has_pre, has_bias, has_stats):
    def kernel(*refs):
        it = iter(refs)
        x_ref = next(it)                               # (Cin_eff, T)
        w_ref = next(it)                               # (Cout_eff, Cin_eff)
        a_ref = next(it) if has_pre else None          # (Cin_eff, 1)
        b_ref = next(it) if has_pre else None          # (Cin_eff, 1)
        bias_ref = next(it) if has_bias else None      # (Cout_eff, 1)
        y_ref = next(it)                               # (Cout_eff, T)
        s_ref = next(it) if has_stats else None        # (Cout_eff, 1)
        q_ref = next(it) if has_stats else None        # (Cout_eff, 1)

        x = x_ref[...].astype(jnp.float32)
        if has_pre:                                    # fused SiLU(BN(prev stage))
            z = x * a_ref[...] + b_ref[...]
            x = z * (1.0 / (1.0 + jnp.exp(-z)))        # SiLU (exp lands on EUP)
        y = jnp.dot(w_ref[...].astype(jnp.float32), x,
                    preferred_element_type=jnp.float32)      # MXU, (Cout_eff, T)
        if has_bias:
            y = y + bias_ref[...]
        y_ref[...] = y.astype(y_ref.dtype)
        if has_stats:                                  # per-tile BN partials
            s_ref[...] = jnp.sum(y, axis=1, keepdims=True)
            q_ref[...] = jnp.sum(y * y, axis=1, keepdims=True)
    return kernel


def _matmul_block(x, w_mat, *, pre_act=None, bias=None, stats=False):
    """Tiled fused conv-as-matmul.

    x      : (B, Cin_eff, HW) f32 activations (channels on sublanes, spatial on lanes)
    w_mat  : (Cout_eff, Cin_eff) f32
    pre_act: optional (a, b) per-input-channel vectors -> input := silu(x*a + b)
    bias   : optional (Cout_eff,) added to every output column
    stats  : if True also return per-tile per-channel (sum, sumsq) partials
    """
    B, cin, hw = x.shape
    cout = w_mat.shape[0]
    tile = _pick_tile(hw, (cin + cout) * 4 * 2)        # x + y tiles, double-buffered
    nt = hw // tile
    has_pre = pre_act is not None
    has_bias = bias is not None

    inputs = [x, w_mat.astype(jnp.float32)]
    in_specs = [
        pl.BlockSpec((None, cin, tile), lambda b, t: (b, 0, t)),
        pl.BlockSpec((cout, cin), lambda b, t: (0, 0)),
    ]
    if has_pre:
        a, b_ = pre_act
        inputs += [a.reshape(cin, 1).astype(jnp.float32),
                   b_.reshape(cin, 1).astype(jnp.float32)]
        in_specs += [pl.BlockSpec((cin, 1), lambda b, t: (0, 0))] * 2
    if has_bias:
        inputs += [bias.reshape(cout, 1).astype(jnp.float32)]
        in_specs += [pl.BlockSpec((cout, 1), lambda b, t: (0, 0))]

    out_shape = [jax.ShapeDtypeStruct((B, cout, hw), jnp.float32)]
    out_specs = [pl.BlockSpec((None, cout, tile), lambda b, t: (b, 0, t))]
    if stats:
        out_shape += [jax.ShapeDtypeStruct((B * nt, cout, 1), jnp.float32)] * 2
        out_specs += [pl.BlockSpec((None, cout, 1),
                                   lambda b, t: (b * nt + t, 0, 0))] * 2

    outs = pl.pallas_call(
        _make_matmul_kernel(has_pre, has_bias, stats),
        out_shape=tuple(out_shape),
        grid_spec=pltpu.PrefetchScalarGridSpec(
            num_scalar_prefetch=0,
            grid=(B, nt),
            in_specs=in_specs,
            out_specs=out_specs),
        compiler_params=pltpu.CompilerParams(
            dimension_semantics=("parallel", "parallel")),
    )(*inputs)

    if stats:
        return outs[0], outs[1], outs[2]
    return outs[0]


# --------------------------------------------------------------------------- #
# Final per-channel affine + SiLU (needs global BN stats of the last conv)
# --------------------------------------------------------------------------- #
def _affine_silu_kernel(x_ref, a_ref, b_ref, o_ref):
    z = x_ref[...] * a_ref[...] + b_ref[...]
    o_ref[...] = z * (1.0 / (1.0 + jnp.exp(-z)))


def _affine_silu(x, a, b):
    B, c, hw = x.shape
    tile = _pick_tile(hw, 2 * c * 4 * 2)
    nt = hw // tile
    return pl.pallas_call(
        _affine_silu_kernel,
        out_shape=jax.ShapeDtypeStruct((B, c, hw), jnp.float32),
        grid_spec=pltpu.PrefetchScalarGridSpec(
            num_scalar_prefetch=0,
            grid=(B, nt),
            in_specs=[pl.BlockSpec((None, c, tile), lambda i, t: (i, 0, t)),
                      pl.BlockSpec((c, 1), lambda i, t: (0, 0)),
                      pl.BlockSpec((c, 1), lambda i, t: (0, 0))],
            out_specs=pl.BlockSpec((None, c, tile), lambda i, t: (i, 0, t))),
        compiler_params=pltpu.CompilerParams(
            dimension_semantics=("parallel", "parallel")),
    )(x, a.reshape(c, 1).astype(jnp.float32), b.reshape(c, 1).astype(jnp.float32))


# --------------------------------------------------------------------------- #
# Host-side glue (tiny per-channel math + pure data plumbing, no heavy compute)
# --------------------------------------------------------------------------- #
def _bn_fold(sum_part, sq_part, count, gamma, beta):
    """Training-mode BatchNorm folded to per-channel (a, b): bn(y) = y*a + b."""
    s = jnp.sum(sum_part, axis=(0, 2))
    q = jnp.sum(sq_part, axis=(0, 2))
    mean = s / count
    var = jnp.maximum(q / count - mean * mean, 0.0)    # biased batch variance
    a = gamma * jax.lax.rsqrt(var + BN_EPS)
    b = beta - mean * a
    return a, b


def _im2col_3x3(x):
    """(B, C, H, W) -> (B, 9*C, H*W); rows ordered (dy, dx) major, channel minor."""
    # TODO(synk): the 9-tap shift/pad expansion is layout plumbing done by XLA;
    # the arithmetic (matmul/BN/SiLU) all runs inside the Pallas kernels.
    B, C, H, W = x.shape
    xp = jnp.pad(x, ((0, 0), (0, 0), (1, 1), (1, 1)))
    slabs = [xp[:, :, dy:dy + H, dx:dx + W] for dy in range(3) for dx in range(3)]
    return jnp.concatenate(slabs, axis=1).reshape(B, 9 * C, H * W)


def proto_forward(x, p):
    """Pallas forward of Proto: cv3(cv2(upsample(cv1(x))))."""
    B, c1, H, W = x.shape
    c_ = p["cv1_w"].shape[0]
    c2 = p["cv3_w"].shape[0]
    x = x.astype(jnp.float32)

    # ---- cv1: 3x3 conv (raw output) + batch stats; BN+SiLU folded into next stage
    w1 = p["cv1_w"].transpose(0, 2, 3, 1).reshape(c_, 9 * c1)
    y1, s1, q1 = _matmul_block(_im2col_3x3(x), w1, stats=True)
    a1, b1 = _bn_fold(s1, q1, B * H * W, p["cv1_g"], p["cv1_b"])

    # ---- upsample: SiLU(BN1(y1)) fused as pre-act, then ConvTranspose2d(2,2,s2)+bias
    wt = p["up_w"].transpose(2, 3, 1, 0).reshape(4 * c_, c_)     # rows: (dy, dx, co)
    y2 = _matmul_block(y1, wt, pre_act=(a1, b1), bias=jnp.tile(p["up_b"], 4))
    H2, W2 = 2 * H, 2 * W
    y2 = (y2.reshape(B, 2, 2, c_, H, W)        # (b, dy, dx, co, h, w)
            .transpose(0, 3, 4, 1, 5, 2)       # (b, co, h, dy, w, dx)
            .reshape(B, c_, H2, W2))           # pixel interleave (XLA plumbing)

    # ---- cv2: 3x3 conv on the raw upsample output + batch stats
    w2 = p["cv2_w"].transpose(0, 2, 3, 1).reshape(c_, 9 * c_)
    y3, s3, q3 = _matmul_block(_im2col_3x3(y2), w2, stats=True)
    a2, b2 = _bn_fold(s3, q3, B * H2 * W2, p["cv2_g"], p["cv2_b"])

    # ---- cv3: SiLU(BN2(y3)) fused as pre-act, 1x1 conv + batch stats
    w3 = p["cv3_w"].reshape(c2, c_)
    y4, s4, q4 = _matmul_block(y3, w3, pre_act=(a2, b2), stats=True)
    a3, b3 = _bn_fold(s4, q4, B * H2 * W2, p["cv3_g"], p["cv3_b"])

    # ---- final BN + SiLU (needs global stats of y4, so it is its own small pass)
    out = _affine_silu(y4, a3, b3)
    return out.reshape(B, c2, H2, W2)


# --------------------------------------------------------------------------- #
# Pure-JAX reference mirroring the PyTorch forward (training-mode BatchNorm)
# --------------------------------------------------------------------------- #
def _silu(x):
    return x * (1.0 / (1.0 + jnp.exp(-x)))


def _bn_train(x, gamma, beta):
    mean = jnp.mean(x, axis=(0, 2, 3), keepdims=True)
    var = jnp.mean((x - mean) ** 2, axis=(0, 2, 3), keepdims=True)
    return ((x - mean) * jax.lax.rsqrt(var + BN_EPS)
            * gamma[None, :, None, None] + beta[None, :, None, None])


def _conv_ref(x, w, pad):
    return jax.lax.conv_general_dilated(
        x, w, window_strides=(1, 1), padding=((pad, pad), (pad, pad)),
        dimension_numbers=("NCHW", "OIHW", "NCHW"),
        precision=jax.lax.Precision.HIGHEST)


def _proto_ref(x, p):
    h = _silu(_bn_train(_conv_ref(x, p["cv1_w"], 1), p["cv1_g"], p["cv1_b"]))
    B, C, H, W = h.shape
    t = jnp.einsum("bchw,cokl->bohkwl", h, p["up_w"],
                   precision=jax.lax.Precision.HIGHEST)
    t = t.reshape(B, C, 2 * H, 2 * W) + p["up_b"][None, :, None, None]
    h = _silu(_bn_train(_conv_ref(t, p["cv2_w"], 1), p["cv2_g"], p["cv2_b"]))
    h = _silu(_bn_train(_conv_ref(h, p["cv3_w"], 0), p["cv3_g"], p["cv3_b"]))
    return h


# --------------------------------------------------------------------------- #
if __name__ == "__main__":
    B, c1, c_, c2 = 2, 8, 16, 8
    H = W = 16

    key = jax.random.PRNGKey(0)
    ks = jax.random.split(key, 12)
    x = jax.random.normal(ks[0], (B, c1, H, W), dtype=jnp.float32)

    def _w(k, shape, fan_in):
        return jax.random.normal(k, shape, dtype=jnp.float32) / np.sqrt(fan_in)

    params = {
        "cv1_w": _w(ks[1], (c_, c1, 3, 3), 9 * c1),
        "cv1_g": 1.0 + 0.1 * jax.random.normal(ks[2], (c_,), jnp.float32),
        "cv1_b": 0.1 * jax.random.normal(ks[3], (c_,), jnp.float32),
        "up_w": _w(ks[4], (c_, c_, 2, 2), 4 * c_),       # (Cin, Cout, kH, kW)
        "up_b": 0.1 * jax.random.normal(ks[5], (c_,), jnp.float32),
        "cv2_w": _w(ks[6], (c_, c_, 3, 3), 9 * c_),
        "cv2_g": 1.0 + 0.1 * jax.random.normal(ks[7], (c_,), jnp.float32),
        "cv2_b": 0.1 * jax.random.normal(ks[8], (c_,), jnp.float32),
        "cv3_w": _w(ks[9], (c2, c_, 1, 1), c_),
        "cv3_g": 1.0 + 0.1 * jax.random.normal(ks[10], (c2,), jnp.float32),
        "cv3_b": 0.1 * jax.random.normal(ks[11], (c2,), jnp.float32),
    }

    out = jax.block_until_ready(proto_forward(x, params))
    ref = _proto_ref(x, params)
    np.testing.assert_allclose(np.asarray(out), np.asarray(ref),
                               rtol=2e-3, atol=2e-3)
    print("KERNEL_OK")
</pallas_src>

<mosaic_0001>
module attributes {stable_mosaic.version = 11 : i64} {
  func.func @kernel(%arg0: i32, %arg1: i32, %arg2: memref<1x72x256xf32, #tpu.memory_space<vmem>>, %arg3: memref<16x72xf32, #tpu.memory_space<vmem>>, %arg4: memref<1x16x256xf32, #tpu.memory_space<vmem>>, %arg5: memref<1x16x1xf32, #tpu.memory_space<vmem>>, %arg6: memref<1x16x1xf32, #tpu.memory_space<vmem>>) attributes {dimension_semantics = [#tpu.dimension_semantics<parallel>, #tpu.dimension_semantics<parallel>], iteration_bounds = array<i64: 2, 1>, scalar_prefetch = 0 : i64, scratch_operands = 0 : i64, tpu.core_type = #tpu.core_type<tc>, window_params = [{transform_indices = @transform_0, window_bounds = array<i64: 1, 72, 256>}, {pipeline_mode = #tpu.pipeline_mode<synchronous>, transform_indices = @transform_1, window_bounds = array<i64: 16, 72>}, {transform_indices = @transform_2, window_bounds = array<i64: 1, 16, 256>}, {transform_indices = @transform_3, window_bounds = array<i64: 1, 16, 1>}, {transform_indices = @transform_4, window_bounds = array<i64: 1, 16, 1>}]} {
    %c0 = arith.constant 0 : index
    %c0_0 = arith.constant 0 : index
    %c0_1 = arith.constant 0 : index
    %0 = vector.load %arg2[%c0, %c0_0, %c0_1] : memref<1x72x256xf32, #tpu.memory_space<vmem>>, vector<1x72x256xf32>
    %1 = vector.shape_cast %0 : vector<1x72x256xf32> to vector<72x256xf32>
    %c0_2 = arith.constant 0 : index
    %c0_3 = arith.constant 0 : index
    %2 = vector.load %arg3[%c0_2, %c0_3] : memref<16x72xf32, #tpu.memory_space<vmem>>, vector<16x72xf32>
    %cst = arith.constant dense<0.000000e+00> : vector<16x256xf32>
    %3 = tpu.matmul %2, %1, %cst {dimension_numbers = #tpu.dot_dimension_numbers<[1], [0], [0], [1], [0, 0, 1, 1], [], []>} : vector<16x72xf32>, vector<72x256xf32>, vector<16x256xf32> -> vector<16x256xf32>
    %c0_4 = arith.constant 0 : index
    %c0_5 = arith.constant 0 : index
    %c0_6 = arith.constant 0 : index
    %4 = vector.load %arg4[%c0_4, %c0_5, %c0_6] : memref<1x16x256xf32, #tpu.memory_space<vmem>>, vector<1x16x256xf32>
    %5 = vector.shape_cast %4 : vector<1x16x256xf32> to vector<16x256xf32>
    %6 = vector.shape_cast %3 : vector<16x256xf32> to vector<1x16x256xf32>
    tpu.vector_store %arg4[%c0_4, %c0_5, %c0_6], %6 {strides = array<i32>} : memref<1x16x256xf32, #tpu.memory_space<vmem>>, vector<1x16x256xf32>,
    %cst_7 = arith.constant dense<0.000000e+00> : vector<16xf32>
    %7 = vector.multi_reduction <add>, %3, %cst_7 [1] : vector<16x256xf32> to vector<16xf32>
    %8 = vector.shape_cast %7 : vector<16xf32> to vector<16x1xf32>
    %c0_8 = arith.constant 0 : index
    %c0_9 = arith.constant 0 : index
    %c0_10 = arith.constant 0 : index
    %9 = vector.load %arg5[%c0_8, %c0_9, %c0_10] : memref<1x16x1xf32, #tpu.memory_space<vmem>>, vector<1x16x1xf32>
    %10 = vector.shape_cast %9 : vector<1x16x1xf32> to vector<16x1xf32>
    %11 = vector.shape_cast %8 : vector<16x1xf32> to vector<1x16x1xf32>
    tpu.vector_store %arg5[%c0_8, %c0_9, %c0_10], %11 {strides = array<i32>} : memref<1x16x1xf32, #tpu.memory_space<vmem>>, vector<1x16x1xf32>,
    %12 = arith.mulf %3, %3 : vector<16x256xf32>
    %cst_11 = arith.constant dense<0.000000e+00> : vector<16xf32>
    %13 = vector.multi_reduction <add>, %12, %cst_11 [1] : vector<16x256xf32> to vector<16xf32>
    %14 = vector.shape_cast %13 : vector<16xf32> to vector<16x1xf32>
    %c0_12 = arith.constant 0 : index
    %c0_13 = arith.constant 0 : index
    %c0_14 = arith.constant 0 : index
    %15 = vector.load %arg6[%c0_12, %c0_13, %c0_14] : memref<1x16x1xf32, #tpu.memory_space<vmem>>, vector<1x16x1xf32>
    %16 = vector.shape_cast %15 : vector<1x16x1xf32> to vector<16x1xf32>
    %17 = vector.shape_cast %14 : vector<16x1xf32> to vector<1x16x1xf32>
    tpu.vector_store %arg6[%c0_12, %c0_13, %c0_14], %17 {strides = array<i32>} : memref<1x16x1xf32, #tpu.memory_space<vmem>>, vector<1x16x1xf32>,
    return
  }
  func.func @transform_0(%arg0: i32, %arg1: i32) -> (i32, i32, i32) {
    %c0_i32 = arith.constant 0 : i32
    %c0_i32_0 = arith.constant 0 : i32
    return %arg0, %c0_i32, %arg1 : i32, i32, i32
  }
  func.func @transform_1(%arg0: i32, %arg1: i32) -> (i32, i32) {
    %c0_i32 = arith.constant 0 : i32
    %c0_i32_0 = arith.constant 0 : i32
    %c0_i32_1 = arith.constant 0 : i32
    return %c0_i32, %c0_i32_0 : i32, i32
  }
  func.func @transform_2(%arg0: i32, %arg1: i32) -> (i32, i32, i32) {
    %c0_i32 = arith.constant 0 : i32
    %c0_i32_0 = arith.constant 0 : i32
    return %arg0, %c0_i32, %arg1 : i32, i32, i32
  }
  func.func @transform_3(%arg0: i32, %arg1: i32) -> (i32, i32, i32) {
    %c1_i32 = arith.constant 1 : i32
    %0 = arith.muli %arg0, %c1_i32 : i32
    %1 = arith.addi %0, %arg1 : i32
    %c0_i32 = arith.constant 0 : i32
    %c0_i32_0 = arith.constant 0 : i32
    %c0_i32_1 = arith.constant 0 : i32
    return %1, %c0_i32, %c0_i32_0 : i32, i32, i32
  }
  func.func @transform_4(%arg0: i32, %arg1: i32) -> (i32, i32, i32) {
    %c1_i32 = arith.constant 1 : i32
    %0 = arith.muli %arg0, %c1_i32 : i32
    %1 = arith.addi %0, %arg1 : i32
    %c0_i32 = arith.constant 0 : i32
    %c0_i32_0 = arith.constant 0 : i32
    %c0_i32_1 = arith.constant 0 : i32
    return %1, %c0_i32, %c0_i32_0 : i32, i32, i32
  }
}

</mosaic_0001>

<llo_original>
// kernel: tpu_custom_call.1
$region0: #{tpu_custom_call.1}
  #allocation0 [shape = 'u32[]', space=smem, size = 0x4, offset = 0x4, fixed_abs, tag = 'smem constant byte address 0x4 - core index']
  #allocation1 [shape = 'u32[144,128]{1,0:T(1,128)}', space=vmem, size = 0x12000, scoped, tag = 'internal scratch']
  %s0 = inlined_call_operand.hbm [shape: f32[2,72,256], index: 0, kind: input, shape index: {}]
  %s1 = inlined_call_operand.hbm [shape: f32[16,72], index: 1, kind: input, shape index: {}]
  %s2 = inlined_call_operand.hbm [shape: f32[2,16,256], index: 2, kind: output, shape index: {0}]
  %s3 = inlined_call_operand.vmem [shape: f32[2,16,1], index: 3, kind: output, shape index: {1}]
  %s4 = inlined_call_operand.vmem [shape: f32[2,16,1], index: 4, kind: output, shape index: {2}]
  %5 = xla_tuple %s2, %s3, %s4
  %s6 = sld [smem:[#allocation0]]
  $region65: #{tpu_custom_call.1} parent=0
    _
  %s8 = ssub.s32 1, %s6
  %s9 = scalar_select 0, %s8, %s6
  $region1: #{tpu_custom_call.1} parent=0
    #allocation2 [shape = 'u8[147456]{0}', space=vmem, size = 0x24000, scoped, tag = 'input window, operand 0']
    #allocation3 [shape = 's32[2]{0}', space=sflag, size = 0x8, scoped, tag = 'scoped memory for tpu_custom_call.1']
    #allocation4 [shape = 's32[2]{0}', space=sflag, size = 0x8, scoped, tag = 'scoped memory for tpu_custom_call.1']
    #allocation5 [shape = 'u8[8192]{0}', space=vmem, size = 0x2000, scoped, tag = 'input window, operand 1, single buffered']
    #allocation6 [shape = 's32[1]{0}', space=sflag, size = 0x4, scoped, tag = 'scoped memory for tpu_custom_call.1']
    #allocation7 [shape = 'u8[32768]{0}', space=vmem, size = 0x8000, scoped, tag = 'output window, operand 0']
    %10 = vsyncpa [#allocation3], 0
    %s11 = scalar_lea.sflag [#allocation3], 1
    %12 = vsyncpa %s11, 0
    %13 = vsyncpa [#allocation6], 0
    %14 = vsyncpa [#allocation4], 0
    %s15 = scalar_lea.sflag [#allocation4], 1
    %16 = vsyncpa %s15, 0
    loop: start=0, step=1, limit=4
    $region2: #{tpu_custom_call.1} parent=1 // loop_pre_header
      _
    $region3: #{tpu_custom_call.1} parent=1 // loop_header
      %s18 = sphi 0, %s22
      %p19 = scmp.ge.s32.totalorder %s18, 4
      %s25 = sphi 0, %s37
      %s26 = sphi 0, %s33
      %s27 = sphi 0, %s25
      %s28 = sphi 0, %s26
      %s29 = sphi 0, %s27
      %s30 = sphi 0, %s28
      %s42 = sphi 0, %s44
      %s45 = sphi 0, %s42
      %s46 = sphi 0, %s45
      %s62 = sphi 0, %s46
      %s66 = sphi 0, %s66
      %s68 = sphi 0, %s66
      %s69 = sphi 0, %s68
      %s83 = sphi 0, %s69
      %s91 = sphi 0, %s93
      %s94 = sphi 0, %s91
      %s95 = sphi 0, %s94
      %s111 = sphi 0, %s95
      %s119 = sphi 0, %s121
      %s122 = sphi 0, %s119
      %s123 = sphi 0, %s122
      %s139 = sphi 0, %s123
      %s147 = sphi 0, %s149
      %s150 = sphi 0, %s147
      %s151 = sphi 0, %s150
      %s167 = sphi 0, %s151
    $region4: #{tpu_custom_call.1} parent=1 // loop_header_branch
      %21 = sbr.rel (%p19) target = $region8
    $region5: #{tpu_custom_call.1} parent=1 // loop_body
      %s23 = ssub.s32 %s18, 1
      %s24 = ssub.s32 %s18, 2
      %s31 = sadd.s32 1, %s26
      %p32 = scmp.ge.s32.totalorder %s31, 1
      %s33 = scalar_select %p32, 0, %s31
      %s34 = sadd.s32 1, %s25
      %s35 = scalar_select %p32, %s34, %s25
      %p36 = scmp.ge.s32.totalorder %s35, 2
      %s37 = scalar_select %p36, 0, %s35
      %s38 = ssub.s32 %s25, %s37
      %s39 = ssub.s32 %s26, %s33
      %s40 = sor.u32 %s38, %s39
      %p41 = scmp.eq.s32.totalorder %s40, 0
      %s43 = sadd.s32 %s42, 1
      %s44 = scalar_select %p41, %s42, %s43
      %p47 = pneg %p41
      %p48 = scmp.eq.s32.totalorder %s18, 1
      %p49 = por %p47, %p48
      %p50 = scmp.ne.s32.totalorder %s42, %s45
      %p51 = scmp.eq.s32.totalorder %s18, 0
      %p52 = por %p50, %p51
      %p53 = scmp.ne.s32.totalorder %s42, %s45
      %p54 = scmp.eq.s32.totalorder %s23, 1
      %p55 = por %p53, %p54
      %p56 = scmp.ne.s32.totalorder %s45, %s46
      %p57 = scmp.eq.s32.totalorder %s23, 0
      %p58 = por %p56, %p57
      %p59 = scmp.ne.s32.totalorder %s45, %s46
      %p60 = scmp.eq.s32.totalorder %s24, 1
      %p61 = por %p59, %p60
      %p63 = scmp.ne.s32.totalorder %s46, %s62
      %p64 = scmp.eq.s32.totalorder %s24, 0
      %p65 = por %p63, %p64
      %s67 = sadd.s32 %s66, 1
      %p70 = scmp.eq.s32.totalorder %s18, 1
      %p71 = scmp.ne.s32.totalorder %s66, %s68
      %p72 = scmp.eq.s32.totalorder %s18, 0
      %p73 = por %p71, %p72
      %p74 = scmp.ne.s32.totalorder %s66, %s68
      %p75 = scmp.eq.s32.totalorder %s23, 1
      %p76 = por %p74, %p75
      %p77 = scmp.ne.s32.totalorder %s68, %s69
      %p78 = scmp.eq.s32.totalorder %s23, 0
      %p79 = por %p77, %p78
      %p80 = scmp.ne.s32.totalorder %s68, %s69
      %p81 = scmp.eq.s32.totalorder %s24, 1
      %p82 = por %p80, %p81
      %p84 = scmp.ne.s32.totalorder %s69, %s83
      %p85 = scmp.eq.s32.totalorder %s24, 0
      %p86 = por %p84, %p85
      %s87 = ssub.s32 %s25, %s37
      %s88 = ssub.s32 %s26, %s33
      %s89 = sor.u32 %s87, %s88
      %p90 = scmp.eq.s32.totalorder %s89, 0
      %s92 = sadd.s32 %s91, 1
      %s93 = scalar_select %p90, %s91, %s92
      %p96 = pneg %p90
      %p97 = scmp.eq.s32.totalorder %s18, 1
      %p98 = por %p96, %p97
      %p99 = scmp.ne.s32.totalorder %s91, %s94
      %p100 = scmp.eq.s32.totalorder %s18, 0
      %p101 = por %p99, %p100
      %p102 = scmp.ne.s32.totalorder %s91, %s94
      %p103 = scmp.eq.s32.totalorder %s23, 1
      %p104 = por %p102, %p103
      %p105 = scmp.ne.s32.totalorder %s94, %s95
      %p106 = scmp.eq.s32.totalorder %s23, 0
      %p107 = por %p105, %p106
      %p108 = scmp.ne.s32.totalorder %s94, %s95
      %p109 = scmp.eq.s32.totalorder %s24, 1
      %p110 = por %p108, %p109
      %p112 = scmp.ne.s32.totalorder %s95, %s111
      %p113 = scmp.eq.s32.totalorder %s24, 0
      %p114 = por %p112, %p113
      %s115 = sadd.s32 %s25, %s26
      %s116 = sadd.s32 %s37, %s33
      %s117 = ssub.s32 %s115, %s116
      %p118 = scmp.eq.s32.totalorder %s117, 0
      %s120 = sadd.s32 %s119, 1
      %s121 = scalar_select %p118, %s119, %s120
      %p124 = pneg %p118
      %p125 = scmp.eq.s32.totalorder %s18, 1
      %p126 = por %p124, %p125
      %p127 = scmp.ne.s32.totalorder %s119, %s122
      %p128 = scmp.eq.s32.totalorder %s18, 0
      %p129 = por %p127, %p128
      %p130 = scmp.ne.s32.totalorder %s119, %s122
      %p131 = scmp.eq.s32.totalorder %s23, 1
      %p132 = por %p130, %p131
      %p133 = scmp.ne.s32.totalorder %s122, %s123
      %p134 = scmp.eq.s32.totalorder %s23, 0
      %p135 = por %p133, %p134
      %p136 = scmp.ne.s32.totalorder %s122, %s123
      %p137 = scmp.eq.s32.totalorder %s24, 1
      %p138 = por %p136, %p137
      %p140 = scmp.ne.s32.totalorder %s123, %s139
      %p141 = scmp.eq.s32.totalorder %s24, 0
      %p142 = por %p140, %p141
      %s143 = sadd.s32 %s25, %s26
      %s144 = sadd.s32 %s37, %s33
      %s145 = ssub.s32 %s143, %s144
      %p146 = scmp.eq.s32.totalorder %s145, 0
      %s148 = sadd.s32 %s147, 1
      %s149 = scalar_select %p146, %s147, %s148
      %p152 = pneg %p146
      %p153 = scmp.eq.s32.totalorder %s18, 1
      %p154 = por %p152, %p153
      %p155 = scmp.ne.s32.totalorder %s147, %s150
      %p156 = scmp.eq.s32.totalorder %s18, 0
      %p157 = por %p155, %p156
      %p158 = scmp.ne.s32.totalorder %s147, %s150
      %p159 = scmp.eq.s32.totalorder %s23, 1
      %p160 = por %p158, %p159
      %p161 = scmp.ne.s32.totalorder %s150, %s151
      %p162 = scmp.eq.s32.totalorder %s23, 0
      %p163 = por %p161, %p162
      %p164 = scmp.ne.s32.totalorder %s150, %s151
      %p165 = scmp.eq.s32.totalorder %s24, 1
      %p166 = por %p164, %p165
      %p168 = scmp.ne.s32.totalorder %s151, %s167
      %p169 = scmp.eq.s32.totalorder %s24, 0
      %p170 = por %p168, %p169
      %p171 = scmp.le.s32.totalorder 1, %s18
      %p172 = scmp.lt.s32.totalorder %s18, 3
      %p173 = pnand %p171, %p172
      %p174 = pneg %p173
      // Predicated region
      $region9: #{tpu_custom_call.1} parent=5 // pred_check
        _
      $region10: #{tpu_custom_call.1} parent=5 // pred_check_branch
        %176 = sbr.rel (%p173) target = $region12
      $region11: #{tpu_custom_call.1} parent=5 // pred_region
        %s177 = ssub.s32 %s18, 1
        // Predicated region
        $region13: #{tpu_custom_call.1} parent=11 // pred_check
          %p178 = pneg %p79
        $region14: #{tpu_custom_call.1} parent=11 // pred_check_branch
          %180 = sbr.rel (%p178) target = $region16
        $region15: #{tpu_custom_call.1} parent=11 // pred_region
          %s182 = ssub.s32 256, 256
          %183 = vsyncadd [#allocation6], %s182
          %s184 = sshll.u32 [#allocation5], 4
          %s185 = int_to_ptr.vmem [resolvable:$true] %s184
          %190 = dma.hbm_to_vmem [thread:$0]  %s1, 256, %s185, [#allocation6], 128, 128, 8
        $region16: #{tpu_custom_call.1} parent=11 // pred_fallthru
          _
      $region12: #{tpu_custom_call.1} parent=5 // pred_fallthru
        _
      %p191 = scmp.lt.s32.totalorder %s18, 2
      // Predicated region
      $region17: #{tpu_custom_call.1} parent=5 // pred_check
        %p192 = pneg %p191
      $region18: #{tpu_custom_call.1} parent=5 // pred_check_branch
        %194 = sbr.rel (%p192) target = $region20
      $region19: #{tpu_custom_call.1} parent=5 // pred_region
        // Predicated region
        $region21: #{tpu_custom_call.1} parent=19 // pred_check
          %p195 = pneg %p52
        $region22: #{tpu_custom_call.1} parent=19 // pred_check_branch
          %197 = sbr.rel (%p195) target = $region24
        $region23: #{tpu_custom_call.1} parent=19 // pred_region
          %s198 = sand.u32 %s42, 1
          %s199 = scalar_lea.sflag [#allocation3], %s198
          %s200 = sand.u32 %s42, 1
          %s201 = smul.addr %s200, 144
          %s202 = scalar_lea.vmem [#allocation2], %s201
          %s203 = smul.u32 2, %s26
          %s205 = ssub.s32 2304, 2304
          %206 = vsyncadd %s199, %s205
          %s207 = smul.addr %s25, 18
          %s208 = sadd.s32 %s203, %s207
          %s209 = smul.addr %s208, 128
          %s210 = scalar_lea.hbm %s0, %s209
          %s211 = sshll.u32 %s202, 4
          %s212 = int_to_ptr.vmem [resolvable:$true] %s211
          %217 = dma.hbm_to_vmem [thread:$0]  %s210, 2304, %s212, %s199, 256, 256, 16
        $region24: #{tpu_custom_call.1} parent=19 // pred_fallthru
          _
      $region20: #{tpu_custom_call.1} parent=5 // pred_fallthru
        _
      %p218 = scmp.le.s32.totalorder 1, %s18
      %p219 = scmp.lt.s32.totalorder %s18, 3
      %p220 = pnand %p218, %p219
      %p221 = pneg %p220
      // Predicated region
      $region25: #{tpu_custom_call.1} parent=5 // pred_check
        _
      $region26: #{tpu_custom_call.1} parent=5 // pred_check_branch
        %223 = sbr.rel (%p220) target = $region28
      $region27: #{tpu_custom_call.1} parent=5 // pred_region
        %s224 = ssub.s32 %s18, 1
        %s225 = sand.u32 %s45, 1
        %s226 = scalar_lea.sflag [#allocation3], %s225
        %s227 = sand.u32 %s45, 1
        %s228 = smul.addr %s227, 144
        %s229 = scalar_lea.vmem [#allocation2], %s228
        // Predicated region
        $region29: #{tpu_custom_call.1} parent=27 // pred_check
          %p230 = pneg %p58
        $region30: #{tpu_custom_call.1} parent=27 // pred_check_branch
          %232 = sbr.rel (%p230) target = $region32
        $region31: #{tpu_custom_call.1} parent=27 // pred_region
          %233 = dma.done %s226, 2304
        $region32: #{tpu_custom_call.1} parent=27 // pred_fallthru
          _
        // Predicated region
        $region33: #{tpu_custom_call.1} parent=27 // pred_check
          %p234 = pneg %p79
        $region34: #{tpu_custom_call.1} parent=27 // pred_check_branch
          %236 = sbr.rel (%p234) target = $region36
        $region35: #{tpu_custom_call.1} parent=27 // pred_region
          %237 = dma.done [#allocation6], 256
        $region36: #{tpu_custom_call.1} parent=27 // pred_fallthru
          _
        %s238 = sand.u32 %s45, 1
        %s239 = scalar_lea.sflag [#allocation3], %s238
        %s240 = sand.u32 %s45, 1
        %s241 = smul.addr %s240, 144
        %s242 = scalar_lea.vmem [#allocation2], %s241
        %p243 = pneg %p58
        %p244 = pneg %p55
        %p245 = pneg %p79
        %p246 = pneg %p76
        %p247 = pneg %p107
        %p248 = pneg %p104
        %s249 = sand.u32 %s94, 1
        %s250 = scalar_lea.sflag [#allocation4], %s249
        %s251 = sand.u32 %s94, 1
        %s252 = smul.addr %s251, 32
        %s253 = scalar_lea.vmem [#allocation7], %s252
        %p254 = pneg %p135
        %p255 = pneg %p132
        %s256 = sadd.s32 %s27, %s28
        %p257 = scmp.lt.s32.totalorder %s256, 1
        %s258 = scalar_select %p257, %s256, 1
        %s259 = smul.addr %s258, 2
        %s260 = smul.addr %s259, 8
        %s261 = scalar_lea.vmem %s3, %s260
        %p262 = pneg %p163
        %p263 = pneg %p160
        %s264 = sadd.s32 %s27, %s28
        %p265 = scmp.lt.s32.totalorder %s264, 1
        %s266 = scalar_select %p265, %s264, 1
        %s267 = smul.addr %s266, 2
        %s268 = smul.addr %s267, 8
        %s269 = scalar_lea.vmem %s4, %s268
        %s270 = smul.u32 2, %s28
        %s271 = smul.u32 2, %s28
        %s272 = sadd.s32 %s27, %s28
        %p273 = scmp.lt.s32.totalorder %s272, 1
        %s274 = scalar_select %p273, %s272, 1
        %s275 = smul.addr %s274, 2
        %s276 = smul.addr %s275, 8
        %s277 = scalar_lea.vmem %s3, %s276
        %s278 = sadd.s32 %s27, %s28
        %s279 = sadd.s32 %s27, %s28
        %p280 = scmp.lt.s32.totalorder %s279, 1
        %s281 = scalar_select %p280, %s279, 1
        %s282 = smul.addr %s281, 2
        %s283 = smul.addr %s282, 8
        %s284 = scalar_lea.vmem %s4, %s283
        %s285 = sadd.s32 %s27, %s28
        %v286 = vld [vmem:[%s229] sm:$0xff]
        %v287 = vld [vmem:[%s229 + $0x8] sm:$0xff]
        %v288 = vld [vmem:[%s229 + $0x10] sm:$0xff]
        %v289 = vld [vmem:[%s229 + $0x18] sm:$0xff]
        %v290 = vld [vmem:[%s229 + $0x20] sm:$0xff]
        %v291 = vld [vmem:[%s229 + $0x28] sm:$0xff]
        %v292 = vld [vmem:[%s229 + $0x30] sm:$0xff]
        %v293 = vld [vmem:[%s229 + $0x38] sm:$0xff]
        %v294 = vld [vmem:[%s229 + $0x40] sm:$0xff]
        %v295 = vld [vmem:[%s229 + $0x48] sm:$0xff]
        %v296 = vld [vmem:[%s229 + $0x50] sm:$0xff]
        %v297 = vld [vmem:[%s229 + $0x58] sm:$0xff]
        %v298 = vld [vmem:[%s229 + $0x60] sm:$0xff]
        %v299 = vld [vmem:[%s229 + $0x68] sm:$0xff]
        %v300 = vld [vmem:[%s229 + $0x70] sm:$0xff]
        %v301 = vld [vmem:[%s229 + $0x78] sm:$0xff]
        %v302 = vld [vmem:[%s229 + $0x80] sm:$0xff]
        %v303 = vld [vmem:[%s229 + $0x88] sm:$0xff]
        %v304 = vld [vmem:[#allocation5] sm:$0xff]
        %v305 = vld [vmem:[#allocation5 + $0x8] sm:$0xff]
        %vm306 = vcmask 588800
        %v308 = vsel %vm306, %v304, 0
        %v311 = vsel %vm306, %v305, 0
        %313 = vmatprep.subr.mxu0 0.0
        %314 = vmatpush1.msra.mxu0 0.0
        %315 = vmatprep.subr.mxu0 0.0
        %316 = vmatpush1.msra.mxu0 0.0
        %317 = vmatprep.subr.mxu0 0.0
        %318 = vmatpush1.msra.mxu0 0.0
        %319 = vmatprep.subr.mxu0 0.0
        %320 = vmatpush1.msra.mxu0 0.0
        %321 = vmatprep.subr.mxu0 0.0
        %322 = vmatpush1.msra.mxu0 0.0
        %323 = vmatprep.subr.mxu0 0.0
        %324 = vmatpush1.msra.mxu0 0.0
        %325 = vmatprep.subr.mxu0 0.0
        %326 = vmatpush1.msra.mxu0 0.0
        %327 = vmatprep.subr.mxu0 %v303
        %328 = vmatpush1.msra.mxu0 %v302
        %329 = vmatprep.subr.mxu0 %v301
        %330 = vmatpush1.msra.mxu0 %v300
        %331 = vmatprep.subr.mxu0 %v299
        %332 = vmatpush1.msra.mxu0 %v298
        %333 = vmatprep.subr.mxu0 %v297
        %334 = vmatpush1.msra.mxu0 %v296
        %335 = vmatprep.subr.mxu0 %v295
        %336 = vmatpush1.msra.mxu0 %v294
        %337 = vmatprep.subr.mxu0 %v293
        %338 = vmatpush1.msra.mxu0 %v292
        %339 = vmatprep.subr.mxu0 %v291
        %340 = vmatpush1.msra.mxu0 %v290
        %341 = vmatprep.subr.mxu0 %v289
        %342 = vmatpush1.msra.mxu0 %v288
        %343 = vmatprep.subr.mxu0 %v287
        %344 = vmatpush1.msra.mxu0 %v286
        %345 = vmatprep.subr.mxu0 0.0
        %346 = vmatpush2.msra.mxu0 0.0
        %347 = vmatprep.subr.mxu0 0.0
        %348 = vmatpush2.msra.mxu0 0.0
        %349 = vmatprep.subr.mxu0 0.0
        %350 = vmatpush2.msra.mxu0 0.0
        %351 = vmatprep.subr.mxu0 0.0
        %352 = vmatpush2.msra.mxu0 0.0
        %353 = vmatprep.subr.mxu0 0.0
        %354 = vmatpush2.msra.mxu0 0.0
        %355 = vmatprep.subr.mxu0 0.0
        %356 = vmatpush2.msra.mxu0 0.0
        %357 = vmatprep.subr.mxu0 0.0
        %358 = vmatpush2.msra.mxu0 0.0
        %359 = vmatprep.subr.mxu0 0.0
        %360 = vmatpush2.msra.mxu0 0.0
        %361 = vmatprep.subr.mxu0 0.0
        %362 = vmatpush2.msra.mxu0 0.0
        %363 = vmatprep.subr.mxu0 0.0
        %364 = vmatpush2.msra.mxu0 0.0
        %365 = vmatprep.subr.mxu0 0.0
        %366 = vmatpush2.msra.mxu0 0.0
        %367 = vmatprep.subr.mxu0 0.0
        %368 = vmatpush2.msra.mxu0 0.0
        %369 = vmatprep.subr.mxu0 0.0
        %370 = vmatpush2.msra.mxu0 0.0
        %371 = vmatprep.subr.mxu0 0.0
        %372 = vmatpush2.msra.mxu0 0.0
        %373 = vmatprep.subr.mxu0 0.0
        %374 = vmatpush2.msra.mxu0 0.0
        %375 = vmatprep.subr.mxu0 0.0
        %376 = vmatpush2.msra.mxu0 0.0
        %377 = vmatprep.mubr.f32.mxu0 0.0
        %378 = vmatmul.mubr.f32.gmra.mxu0 %v308
        %v379 = vpop.f32.mrf.mxu0
        %v380 = vadd.f32 0.0, %v379
        %v381 = vpop.f32.mrf.mxu0
        %v382 = vadd.f32 0.0, %v381
        %383 = vmatprep.mubr.f32.mxu0 0.0
        %384 = vmatmul.mubr.f32.gmra.mxu0 %v311
        %v385 = vpop.f32.mrf.mxu0
        %v386 = vadd.f32 0.0, %v385
        %v387 = vpop.f32.mrf.mxu0
        %v388 = vadd.f32 0.0, %v387
        %389 = vdwg.mxu0
        %390 = vst [vmem:[%s253] sm:$0xff] %v380
        %391 = vst [vmem:[%s253 + $0x8] sm:$0xff] %v382
        %392 = vst [vmem:[%s253 + $0x10] sm:$0xff] %v386
        %393 = vst [vmem:[%s253 + $0x18] sm:$0xff] %v388
        %v394 = vadd.f32 %v380, %v382
        %395 = vadd.xlane.f32.xlu0 %v394
        %v396 = vpop.xlane.xlu0 %395
        %v397 = vadd.f32 %v386, %v388
        %398 = vadd.xlane.f32.xlu0 %v397
        %v399 = vpop.xlane.xlu0 %398
        %vm400 = vcmask 7168
        %401 = vst.msk [vmem:[%s277] sm:$0xff] %vm400, %v396
        %402 = vst.msk [vmem:[%s277 + $0x8] sm:$0xff] %vm400, %v399
        %v403 = vmul.f32 %v380, %v380
        %v404 = vmul.f32 %v382, %v382
        %v405 = vmul.f32 %v386, %v386
        %v406 = vmul.f32 %v388, %v388
        %v407 = vadd.f32 %v403, %v404
        %408 = vadd.xlane.f32.xlu0 %v407
        %v409 = vpop.xlane.xlu0 %408
        %v410 = vadd.f32 %v405, %v406
        %411 = vadd.xlane.f32.xlu0 %v410
        %v412 = vpop.xlane.xlu0 %411
        %413 = vst.msk [vmem:[%s284] sm:$0xff] %vm400, %v409
        %414 = vst.msk [vmem:[%s284 + $0x8] sm:$0xff] %vm400, %v412
        %s415 = sand.u32 %s94, 1
        %s416 = scalar_lea.sflag [#allocation4], %s415
        %s417 = sand.u32 %s94, 1
        %s418 = smul.addr %s417, 32
        %s419 = scalar_lea.vmem [#allocation7], %s418
        %s420 = sadd.s32 %s27, %s28
        %p421 = scmp.lt.s32.totalorder %s420, 1
        %s422 = scalar_select %p421, %s420, 1
        %s423 = smul.addr %s422, 2
        %s424 = smul.addr %s423, 8
        %s425 = scalar_lea.vmem %s3, %s424
        %s426 = sadd.s32 %s27, %s28
        %p427 = scmp.lt.s32.totalorder %s426, 1
        %s428 = scalar_select %p427, %s426, 1
        %s429 = smul.addr %s428, 2
        %s430 = smul.addr %s429, 8
        %s431 = scalar_lea.vmem %s4, %s430
        // Predicated region
        $region37: #{tpu_custom_call.1} parent=27 // pred_check
          %p432 = pneg %p104
        $region38: #{tpu_custom_call.1} parent=27 // pred_check_branch
          %434 = sbr.rel (%p432) target = $region40
        $region39: #{tpu_custom_call.1} parent=27 // pred_region
          %s435 = smul.u32 2, %s28
          %s437 = ssub.s32 512, 512
          %438 = vsyncadd %s416, %s437
          %s439 = smul.addr %s27, 4
          %s440 = sadd.s32 %s435, %s439
          %s441 = smul.addr %s440, 128
          %s442 = scalar_lea.hbm %s2, %s441
          %s443 = sshll.u32 %s419, 4
          %s444 = int_to_ptr.vmem [resolvable:$true] %s443
          %449 = dma.vmem_to_hbm [thread:$0]  %s444, 512, %s442, %s416, 256, 256, 16
        $region40: #{tpu_custom_call.1} parent=27 // pred_fallthru
          _
        // Predicated region
        $region41: #{tpu_custom_call.1} parent=27 // pred_check
          %p450 = pneg %p132
        $region42: #{tpu_custom_call.1} parent=27 // pred_check_branch
          %452 = sbr.rel (%p450) target = $region44
        $region43: #{tpu_custom_call.1} parent=27 // pred_region
          %s453 = sadd.s32 %s27, %s28
        $region44: #{tpu_custom_call.1} parent=27 // pred_fallthru
          _
        // Predicated region
        $region45: #{tpu_custom_call.1} parent=27 // pred_check
          %p454 = pneg %p160
        $region46: #{tpu_custom_call.1} parent=27 // pred_check_branch
          %456 = sbr.rel (%p454) target = $region48
        $region47: #{tpu_custom_call.1} parent=27 // pred_region
          %s457 = sadd.s32 %s27, %s28
        $region48: #{tpu_custom_call.1} parent=27 // pred_fallthru
          _
      $region28: #{tpu_custom_call.1} parent=5 // pred_fallthru
        _
      %p458 = scmp.le.s32.totalorder 2, %s18
      // Predicated region
      $region49: #{tpu_custom_call.1} parent=5 // pred_check
        %p459 = pneg %p458
      $region50: #{tpu_custom_call.1} parent=5 // pred_check_branch
        %461 = sbr.rel (%p459) target = $region52
      $region51: #{tpu_custom_call.1} parent=5 // pred_region
        %s462 = ssub.s32 %s18, 2
        // Predicated region
        $region53: #{tpu_custom_call.1} parent=51 // pred_check
          %p463 = pneg %p110
        $region54: #{tpu_custom_call.1} parent=51 // pred_check_branch
          %465 = sbr.rel (%p463) target = $region56
        $region55: #{tpu_custom_call.1} parent=51 // pred_region
          %s466 = sand.u32 %s95, 1
          %s467 = scalar_lea.sflag [#allocation4], %s466
          %s468 = sand.u32 %s95, 1
          %s469 = smul.addr %s468, 32
          %s470 = scalar_lea.vmem [#allocation7], %s469
          %471 = dma.done %s467, 512
        $region56: #{tpu_custom_call.1} parent=51 // pred_fallthru
          _
        // Predicated region
        $region57: #{tpu_custom_call.1} parent=51 // pred_check
          %p472 = pneg %p138
        $region58: #{tpu_custom_call.1} parent=51 // pred_check_branch
          %474 = sbr.rel (%p472) target = $region60
        $region59: #{tpu_custom_call.1} parent=51 // pred_region
          %s475 = sadd.s32 %s29, %s30
          %p476 = scmp.lt.s32.totalorder %s475, 1
          %s477 = scalar_select %p476, %s475, 1
          %s478 = smul.addr %s477, 2
          %s479 = smul.addr %s478, 8
          %s480 = scalar_lea.vmem %s3, %s479
        $region60: #{tpu_custom_call.1} parent=51 // pred_fallthru
          _
        // Predicated region
        $region61: #{tpu_custom_call.1} parent=51 // pred_check
          %p481 = pneg %p166
        $region62: #{tpu_custom_call.1} parent=51 // pred_check_branch
          %483 = sbr.rel (%p481) target = $region64
        $region63: #{tpu_custom_call.1} parent=51 // pred_region
          %s484 = sadd.s32 %s29, %s30
          %p485 = scmp.lt.s32.totalorder %s484, 1
          %s486 = scalar_select %p485, %s484, 1
          %s487 = smul.addr %s486, 2
          %s488 = smul.addr %s487, 8
          %s489 = scalar_lea.vmem %s4, %s488
        $region64: #{tpu_custom_call.1} parent=51 // pred_fallthru
          _
      $region52: #{tpu_custom_call.1} parent=5 // pred_fallthru
        _
    $region6: #{tpu_custom_call.1} parent=1 // loop_footer
      %s22 = sadd.s32 1, %s18
    $region7: #{tpu_custom_call.1} parent=1 // loop_footer_branch
      %17 = sbr.rel target = $region3
    $region8: #{tpu_custom_call.1} parent=1 // loop_exit
      _
    %490 = vsyncpa [#allocation3], 1
    %s491 = scalar_lea.sflag [#allocation3], 1
    %492 = vsyncpa %s491, 1
    %493 = vsyncpa [#allocation6], 1
    %494 = vsyncpa [#allocation4], 1
    %s495 = scalar_lea.sflag [#allocation4], 1
    %496 = vsyncpa %s495, 1

</llo_original>
